<compile_context>
chip_gen: v5e
topology: v5e:2x2
jax: 0.10.0
libtpu: 0.0.40
codegen_flags: <defaults>
</compile_context>

<pallas_src>
import math

import jax
import jax.numpy as jnp
from jax.experimental import pallas as pl
from jax.experimental.pallas import tpu as pltpu

LANE = 128


def _round_up(n, m):
    return ((n + m - 1) // m) * m


# ----------------------------------------------------------------------------
# Kernel: fused (Linear + ReLU) * (num_layers - 1) + Linear over one batch tile
# ----------------------------------------------------------------------------
def _mlp_kernel_factory(num_layers):
    def kernel(*refs):
        # refs = x_ref, (w_ref, b_ref) * num_layers, o_ref
        x_ref = refs[0]
        o_ref = refs[-1]
        wb = refs[1:-1]

        # Cast to bf16 in VMEM (MXU inputs); accumulate in f32.
        h = x_ref[...].astype(jnp.bfloat16)          # [TB, in_f] bf16
        for li in range(num_layers):
            w = wb[2 * li][...]                      # bf16 [in_dim, out_dim]
            b = wb[2 * li + 1][...]                  # f32  [1, out_dim]
            acc = jnp.dot(h, w, preferred_element_type=jnp.float32) + b
            if li != num_layers - 1:
                # ReLU in f32, back to bf16 for the next MXU matmul.
                h = jnp.maximum(acc, 0.0).astype(jnp.bfloat16)
            else:
                o_ref[...] = acc.astype(o_ref.dtype)

    return kernel


# ----------------------------------------------------------------------------
# One-time parameter preprocessing
#   * weights -> bf16, biases -> f32 [1, out]
#   * only intermediate (hidden) feature dims are padded to 128; the network
#     input dim and the final output dim stay unpadded (full-last-dim blocks).
# ----------------------------------------------------------------------------
def prepare_params(weights, biases):
    n = len(weights)
    pw, pb = [], []
    for li, (w, b) in enumerate(zip(weights, biases)):
        in_f, out_f = w.shape
        in_p = in_f if li == 0 else _round_up(in_f, LANE)
        out_p = out_f if li == n - 1 else _round_up(out_f, LANE)
        wp = jnp.zeros((in_p, out_p), jnp.float32).at[:in_f, :out_f].set(w)
        bp = jnp.zeros((1, out_p), jnp.float32).at[:, :out_f].set(b)
        pw.append(wp.astype(jnp.bfloat16))
        pb.append(bp)
    return pw, pb


# ----------------------------------------------------------------------------
# Wrapper
# ----------------------------------------------------------------------------
def mlp_forward(x, weights_p, biases_p, *, block_batch=1024):
    """y = MLP(x) as one Pallas call.

    x: [batch, nb_input] f32 (raw, unpadded).
    Returns [batch, nb_output] f32 (raw, unpadded) — no wrapper pad/slice.
    """
    assert len(weights_p) == len(biases_p)
    num_layers = len(weights_p)
    batch, in_f = x.shape
    assert weights_p[0].shape[0] == in_f
    nb_out = weights_p[-1].shape[1]

    # Batch tile: multiple of 16 (bf16 packs 16 sublanes/vreg), capped by
    # block_batch, and small enough that moderate batches produce >= 2 grid
    # steps so both v7x TensorCores get work on the "parallel" axis.
    tb_target = max(16, min(_round_up(block_batch, 16),
                            _round_up(pl.cdiv(batch, 2), 16)))
    if tb_target >= batch:
        tb = batch          # single block == full batch dim (always legal)
    else:
        tb = tb_target      # multiple of 16; trailing partial block is masked
    grid = (pl.cdiv(batch, tb),)

    # x / out are tiled over the batch axis (full last dim -> contiguous DMA).
    in_specs = [pl.BlockSpec((tb, in_f), lambda i: (i, 0))]
    args = [x]
    for w, b in zip(weights_p, biases_p):
        # Constant block index -> weights/biases stay VMEM-resident.
        in_specs.append(pl.BlockSpec(w.shape, lambda i: (0, 0)))
        in_specs.append(pl.BlockSpec(b.shape, lambda i: (0, 0)))
        args.append(w)
        args.append(b)

    flops = 2 * batch * sum(int(w.shape[0]) * int(w.shape[1]) for w in weights_p)
    bytes_accessed = (
        x.size * x.dtype.itemsize
        + sum(w.size * w.dtype.itemsize for w in weights_p)
        + sum(b.size * b.dtype.itemsize for b in biases_p)
        + batch * nb_out * 4
    )

    return pl.pallas_call(
        _mlp_kernel_factory(num_layers),
        out_shape=jax.ShapeDtypeStruct((batch, nb_out), jnp.float32),
        grid=grid,
        in_specs=in_specs,
        out_specs=pl.BlockSpec((tb, nb_out), lambda i: (i, 0)),
        compiler_params=pltpu.CompilerParams(
            dimension_semantics=("parallel",),
            vmem_limit_bytes=32 << 20,   # tiles are KB-to-MB scale; ample headroom
        ),
        cost_estimate=pl.CostEstimate(
            flops=flops, transcendentals=0, bytes_accessed=bytes_accessed),
    )(*args)


# ----------------------------------------------------------------------------
# Parameter init mimicking nn.Linear defaults (U(-1/sqrt(fan_in), +))
# ----------------------------------------------------------------------------
def init_nn_params(key, nb_input, nb_output, nb_hidden_layer, size_hidden_layer):
    # Effective architecture (add_module name collision => at most 1 hidden block):
    dims = [nb_input, size_hidden_layer]
    if nb_hidden_layer >= 1:
        dims.append(size_hidden_layer)
    dims.append(nb_output)

    weights, biases = [], []
    for i in range(len(dims) - 1):
        fan_in, fan_out = dims[i], dims[i + 1]
        bound = 1.0 / math.sqrt(fan_in)
        key, kw, kb = jax.random.split(key, 3)
        # PyTorch stores W as [out, in]; we store the transposed [in, out].
        w = jax.random.uniform(kw, (fan_in, fan_out), jnp.float32, -bound, bound)
        b = jax.random.uniform(kb, (1, fan_out), jnp.float32, -bound, bound)
        weights.append(w)
        biases.append(b)
    return weights, biases


# ----------------------------------------------------------------------------
# Reference (same bf16-input / f32-accumulate numerics as the kernel)
# ----------------------------------------------------------------------------
def mlp_reference(x, weights, biases):
    h = x
    n = len(weights)
    for i, (w, b) in enumerate(zip(weights, biases)):
        h = jnp.dot(h.astype(jnp.bfloat16), w.astype(jnp.bfloat16),
                    preferred_element_type=jnp.float32) + b
        if i != n - 1:
            h = jnp.maximum(h, 0.0)
    return h


if __name__ == "__main__":
    # Small, snake-game-like configuration.
    nb_input = 11            # typical snake state vector
    nb_output = 3            # actions: straight / left / right
    nb_hidden_layer = 3      # collapses to 1 effective hidden layer (see note above)
    size_hidden_layer = 32
    batch = 8

    key = jax.random.PRNGKey(0)
    key, kx, kx2 = jax.random.split(key, 3)
    x = jax.random.normal(kx, (batch, nb_input), jnp.float32)

    weights, biases = init_nn_params(
        key, nb_input, nb_output, nb_hidden_layer, size_hidden_layer
    )
    pw, pb = prepare_params(weights, biases)

    # --- single-tile path (batch=8, tb == batch) ---
    out = mlp_forward(x, pw, pb)
    out = jax.block_until_ready(out)
    ref = mlp_reference(x, weights, biases)
    assert out.shape == (batch, nb_output)
    assert jnp.allclose(out, ref, atol=1e-4, rtol=1e-4), \
        "mismatch vs JAX reference (batch=8)"

    # --- multi-step grid with a partial trailing block (batch=300, tb=128 -> grid=3) ---
    batch2 = 300
    x2 = jax.random.normal(kx2, (batch2, nb_input), jnp.float32)
    out2 = mlp_forward(x2, pw, pb, block_batch=128)
    out2 = jax.block_until_ready(out2)
    ref2 = mlp_reference(x2, weights, biases)
    assert out2.shape == (batch2, nb_output)
    assert jnp.allclose(out2, ref2, atol=1e-4, rtol=1e-4), \
        "mismatch vs JAX reference (batch=300)"

    print("KERNEL_OK")
</pallas_src>

<mosaic_0001>
module attributes {stable_mosaic.version = 11 : i64} {
  func.func @kernel(%arg0: i32, %arg1: memref<8x11xf32, #tpu.memory_space<vmem>>, %arg2: memref<11x128xbf16, #tpu.memory_space<vmem>>, %arg3: memref<1x128xf32, #tpu.memory_space<vmem>>, %arg4: memref<128x128xbf16, #tpu.memory_space<vmem>>, %arg5: memref<1x128xf32, #tpu.memory_space<vmem>>, %arg6: memref<128x3xbf16, #tpu.memory_space<vmem>>, %arg7: memref<1x3xf32, #tpu.memory_space<vmem>>, %arg8: memref<8x3xf32, #tpu.memory_space<vmem>>) attributes {dimension_semantics = [#tpu.dimension_semantics<parallel>], iteration_bounds = array<i64: 1>, scalar_prefetch = 0 : i64, scratch_operands = 0 : i64, tpu.core_type = #tpu.core_type<tc>, window_params = [{transform_indices = @transform_0, window_bounds = array<i64: 8, 11>}, {pipeline_mode = #tpu.pipeline_mode<synchronous>, transform_indices = @transform_1, window_bounds = array<i64: 11, 128>}, {pipeline_mode = #tpu.pipeline_mode<synchronous>, transform_indices = @transform_2, window_bounds = array<i64: 1, 128>}, {pipeline_mode = #tpu.pipeline_mode<synchronous>, transform_indices = @transform_3, window_bounds = array<i64: 128, 128>}, {pipeline_mode = #tpu.pipeline_mode<synchronous>, transform_indices = @transform_4, window_bounds = array<i64: 1, 128>}, {pipeline_mode = #tpu.pipeline_mode<synchronous>, transform_indices = @transform_5, window_bounds = array<i64: 128, 3>}, {pipeline_mode = #tpu.pipeline_mode<synchronous>, transform_indices = @transform_6, window_bounds = array<i64: 1, 3>}, {transform_indices = @transform_7, window_bounds = array<i64: 8, 3>}]} {
    %c0 = arith.constant 0 : index
    %c0_0 = arith.constant 0 : index
    %0 = vector.load %arg1[%c0, %c0_0] : memref<8x11xf32, #tpu.memory_space<vmem>>, vector<8x11xf32>
    %1 = arith.truncf %0 : vector<8x11xf32> to vector<8x11xbf16>
    %c0_1 = arith.constant 0 : index
    %c0_2 = arith.constant 0 : index
    %2 = vector.load %arg2[%c0_1, %c0_2] : memref<11x128xbf16, #tpu.memory_space<vmem>>, vector<11x128xbf16>
    %c0_3 = arith.constant 0 : index
    %c0_4 = arith.constant 0 : index
    %3 = vector.load %arg3[%c0_3, %c0_4] : memref<1x128xf32, #tpu.memory_space<vmem>>, vector<1x128xf32>
    %cst = arith.constant dense<0.000000e+00> : vector<8x128xf32>
    %4 = tpu.matmul %1, %2, %cst {dimension_numbers = #tpu.dot_dimension_numbers<[1], [0], [0], [1], [0, 0, 1, 1], [], []>} : vector<8x11xbf16>, vector<11x128xbf16>, vector<8x128xf32> -> vector<8x128xf32>
    %5 = vector.broadcast %3 : vector<1x128xf32> to vector<8x128xf32>
    %6 = arith.addf %4, %5 : vector<8x128xf32>
    %cst_5 = arith.constant 0.000000e+00 : f32
    %7 = vector.broadcast %cst_5 : f32 to vector<8x128xf32>
    %8 = arith.maximumf %6, %7 : vector<8x128xf32>
    %9 = arith.truncf %8 : vector<8x128xf32> to vector<8x128xbf16>
    %c0_6 = arith.constant 0 : index
    %c0_7 = arith.constant 0 : index
    %10 = vector.load %arg4[%c0_6, %c0_7] : memref<128x128xbf16, #tpu.memory_space<vmem>>, vector<128x128xbf16>
    %c0_8 = arith.constant 0 : index
    %c0_9 = arith.constant 0 : index
    %11 = vector.load %arg5[%c0_8, %c0_9] : memref<1x128xf32, #tpu.memory_space<vmem>>, vector<1x128xf32>
    %cst_10 = arith.constant dense<0.000000e+00> : vector<8x128xf32>
    %12 = tpu.matmul %9, %10, %cst_10 {dimension_numbers = #tpu.dot_dimension_numbers<[1], [0], [0], [1], [0, 0, 1, 1], [], []>} : vector<8x128xbf16>, vector<128x128xbf16>, vector<8x128xf32> -> vector<8x128xf32>
    %13 = vector.broadcast %11 : vector<1x128xf32> to vector<8x128xf32>
    %14 = arith.addf %12, %13 : vector<8x128xf32>
    %cst_11 = arith.constant 0.000000e+00 : f32
    %15 = vector.broadcast %cst_11 : f32 to vector<8x128xf32>
    %16 = arith.maximumf %14, %15 : vector<8x128xf32>
    %17 = arith.truncf %16 : vector<8x128xf32> to vector<8x128xbf16>
    %c0_12 = arith.constant 0 : index
    %c0_13 = arith.constant 0 : index
    %18 = vector.load %arg6[%c0_12, %c0_13] : memref<128x3xbf16, #tpu.memory_space<vmem>>, vector<128x3xbf16>
    %c0_14 = arith.constant 0 : index
    %c0_15 = arith.constant 0 : index
    %19 = vector.load %arg7[%c0_14, %c0_15] : memref<1x3xf32, #tpu.memory_space<vmem>>, vector<1x3xf32>
    %cst_16 = arith.constant dense<0.000000e+00> : vector<8x3xf32>
    %20 = tpu.matmul %17, %18, %cst_16 {dimension_numbers = #tpu.dot_dimension_numbers<[1], [0], [0], [1], [0, 0, 1, 1], [], []>} : vector<8x128xbf16>, vector<128x3xbf16>, vector<8x3xf32> -> vector<8x3xf32>
    %21 = vector.broadcast %19 : vector<1x3xf32> to vector<8x3xf32>
    %22 = arith.addf %20, %21 : vector<8x3xf32>
    %c0_17 = arith.constant 0 : index
    %c0_18 = arith.constant 0 : index
    %23 = vector.load %arg8[%c0_17, %c0_18] : memref<8x3xf32, #tpu.memory_space<vmem>>, vector<8x3xf32>
    tpu.vector_store %arg8[%c0_17, %c0_18], %22 {strides = array<i32>} : memref<8x3xf32, #tpu.memory_space<vmem>>, vector<8x3xf32>,
    return
  }
  func.func @transform_0(%arg0: i32) -> (i32, i32) {
    %c0_i32 = arith.constant 0 : i32
    %c0_i32_0 = arith.constant 0 : i32
    return %arg0, %c0_i32 : i32, i32
  }
  func.func @transform_1(%arg0: i32) -> (i32, i32) {
    %c0_i32 = arith.constant 0 : i32
    %c0_i32_0 = arith.constant 0 : i32
    %c0_i32_1 = arith.constant 0 : i32
    return %c0_i32, %c0_i32_0 : i32, i32
  }
  func.func @transform_2(%arg0: i32) -> (i32, i32) {
    %c0_i32 = arith.constant 0 : i32
    %c0_i32_0 = arith.constant 0 : i32
    %c0_i32_1 = arith.constant 0 : i32
    return %c0_i32, %c0_i32_0 : i32, i32
  }
  func.func @transform_3(%arg0: i32) -> (i32, i32) {
    %c0_i32 = arith.constant 0 : i32
    %c0_i32_0 = arith.constant 0 : i32
    %c0_i32_1 = arith.constant 0 : i32
    return %c0_i32, %c0_i32_0 : i32, i32
  }
  func.func @transform_4(%arg0: i32) -> (i32, i32) {
    %c0_i32 = arith.constant 0 : i32
    %c0_i32_0 = arith.constant 0 : i32
    %c0_i32_1 = arith.constant 0 : i32
    return %c0_i32, %c0_i32_0 : i32, i32
  }
  func.func @transform_5(%arg0: i32) -> (i32, i32) {
    %c0_i32 = arith.constant 0 : i32
    %c0_i32_0 = arith.constant 0 : i32
    %c0_i32_1 = arith.constant 0 : i32
    return %c0_i32, %c0_i32_0 : i32, i32
  }
  func.func @transform_6(%arg0: i32) -> (i32, i32) {
    %c0_i32 = arith.constant 0 : i32
    %c0_i32_0 = arith.constant 0 : i32
    %c0_i32_1 = arith.constant 0 : i32
    return %c0_i32, %c0_i32_0 : i32, i32
  }
  func.func @transform_7(%arg0: i32) -> (i32, i32) {
    %c0_i32 = arith.constant 0 : i32
    %c0_i32_0 = arith.constant 0 : i32
    return %arg0, %c0_i32 : i32, i32
  }
}

</mosaic_0001>

<llo_original>
// kernel: tpu_custom_call.1
$region0: #{tpu_custom_call.1}
  #allocation0 [shape = 'u32[]', space=smem, size = 0x4, offset = 0x4, fixed_abs, tag = 'smem constant byte address 0x4 - core index']
  #allocation1 [shape = 'u32[72,128]{1,0:T(1,128)}', space=vmem, size = 0x9000, scoped, tag = 'internal scratch']
  %s0 = inlined_call_operand.hbm [shape: f32[8,11], index: 0, kind: input, shape index: {}]
  %s1 = inlined_call_operand.hbm [shape: bf16[11,128], index: 1, kind: input, shape index: {}]
  %s2 = inlined_call_operand.vmem [shape: f32[1,128], index: 2, kind: input, shape index: {}]
  %s3 = inlined_call_operand.vmem [shape: bf16[128,128], index: 3, kind: input, shape index: {}]
  %s4 = inlined_call_operand.vmem [shape: f32[1,128], index: 4, kind: input, shape index: {}]
  %s5 = inlined_call_operand.vmem [shape: bf16[128,3], index: 5, kind: input, shape index: {}]
  %s6 = inlined_call_operand.vmem [shape: f32[1,3], index: 6, kind: input, shape index: {}]
  %s7 = inlined_call_operand.vmem [shape: f32[8,3], index: 7, kind: output, shape index: {}]
  %s8 = sld [smem:[#allocation0]]
  $region46: #{tpu_custom_call.1} parent=0
    _
  %s10 = ssub.s32 1, %s8
  %s11 = scalar_select 0, %s10, %s8
  $region1: #{tpu_custom_call.1} parent=0
    #allocation2 [shape = 'u8[4096]{0}', space=vmem, size = 0x1000, scoped, tag = 'input window, operand 0, single buffered']
    #allocation3 [shape = 's32[1]{0}', space=sflag, size = 0x4, scoped, tag = 'scoped memory for tpu_custom_call.1']
    #allocation4 [shape = 'u8[4096]{0}', space=vmem, size = 0x1000, scoped, tag = 'input window, operand 1, single buffered']
    #allocation5 [shape = 's32[1]{0}', space=sflag, size = 0x4, scoped, tag = 'scoped memory for tpu_custom_call.1']
    %12 = vsyncpa [#allocation3], 0
    %13 = vsyncpa [#allocation5], 0
    // Predicated region
    $region2: #{tpu_custom_call.1} parent=1 // pred_check
      _
    $region3: #{tpu_custom_call.1} parent=1 // pred_check_branch
      %15 = sbr.rel (0) target = $region5
    $region4: #{tpu_custom_call.1} parent=1 // pred_region
      %17 = vsyncadd [#allocation3], 0
      %s19 = sshll.u32 %s0, 4
      %s20 = int_to_ptr.hbm [resolvable:$true] %s19
      %s21 = sshll.u32 [#allocation2], 4
      %s22 = int_to_ptr.vmem [resolvable:$true] %s21
      %24 = dma.hbm_to_vmem [thread:$0]  %s20, 128, %s22, [#allocation3]
    $region5: #{tpu_custom_call.1} parent=1 // pred_fallthru
      _
    // Predicated region
    $region6: #{tpu_custom_call.1} parent=1 // pred_check
      _
    $region7: #{tpu_custom_call.1} parent=1 // pred_check_branch
      %26 = sbr.rel (0) target = $region9
    $region8: #{tpu_custom_call.1} parent=1 // pred_region
      %28 = vsyncadd [#allocation5], 0
      %s29 = sshll.u32 %s1, 4
      %s30 = int_to_ptr.hbm [resolvable:$true] %s29
      %s31 = sshll.u32 [#allocation4], 4
      %s32 = int_to_ptr.vmem [resolvable:$true] %s31
      %37 = dma.hbm_to_vmem [thread:$0]  %s30, 128, %s32, [#allocation5], 64, 64, 4
    $region9: #{tpu_custom_call.1} parent=1 // pred_fallthru
      _
    // Predicated region
    $region10: #{tpu_custom_call.1} parent=1 // pred_check
      _
    $region11: #{tpu_custom_call.1} parent=1 // pred_check_branch
      %39 = sbr.rel (0) target = $region13
    $region12: #{tpu_custom_call.1} parent=1 // pred_region
      _
    $region13: #{tpu_custom_call.1} parent=1 // pred_fallthru
      _
    // Predicated region
    $region14: #{tpu_custom_call.1} parent=1 // pred_check
      _
    $region15: #{tpu_custom_call.1} parent=1 // pred_check_branch
      %41 = sbr.rel (0) target = $region17
    $region16: #{tpu_custom_call.1} parent=1 // pred_region
      _
    $region17: #{tpu_custom_call.1} parent=1 // pred_fallthru
      _
    // Predicated region
    $region18: #{tpu_custom_call.1} parent=1 // pred_check
      _
    $region19: #{tpu_custom_call.1} parent=1 // pred_check_branch
      %43 = sbr.rel (0) target = $region21
    $region20: #{tpu_custom_call.1} parent=1 // pred_region
      _
    $region21: #{tpu_custom_call.1} parent=1 // pred_fallthru
      _
    // Predicated region
    $region22: #{tpu_custom_call.1} parent=1 // pred_check
      _
    $region23: #{tpu_custom_call.1} parent=1 // pred_check_branch
      %45 = sbr.rel (0) target = $region25
    $region24: #{tpu_custom_call.1} parent=1 // pred_region
      _
    $region25: #{tpu_custom_call.1} parent=1 // pred_fallthru
      _
    // Predicated region
    $region26: #{tpu_custom_call.1} parent=1 // pred_check
      _
    $region27: #{tpu_custom_call.1} parent=1 // pred_check_branch
      %47 = sbr.rel (0) target = $region29
    $region28: #{tpu_custom_call.1} parent=1 // pred_region
      _
    $region29: #{tpu_custom_call.1} parent=1 // pred_fallthru
      _
    // Predicated region
    $region30: #{tpu_custom_call.1} parent=1 // pred_check
      _
    $region31: #{tpu_custom_call.1} parent=1 // pred_check_branch
      %49 = sbr.rel (0) target = $region33
    $region32: #{tpu_custom_call.1} parent=1 // pred_region
      %51 = dma.done [#allocation3], 128
    $region33: #{tpu_custom_call.1} parent=1 // pred_fallthru
      _
    // Predicated region
    $region34: #{tpu_custom_call.1} parent=1 // pred_check
      _
    $region35: #{tpu_custom_call.1} parent=1 // pred_check_branch
      %53 = sbr.rel (0) target = $region37
    $region36: #{tpu_custom_call.1} parent=1 // pred_region
      %55 = dma.done [#allocation5], 128
    $region37: #{tpu_custom_call.1} parent=1 // pred_fallthru
      _
    %v57 = vld [vmem:[#allocation2] sm:$0xff]
    %v58 = vpack.c.bf16 %v57, %v57
    %v59 = vld [vmem:[#allocation4] sm:$0xf]
    %v60 = vld [vmem:[#allocation4 + $0x4] sm:$0x3]
    %v61 = vld [vmem:[%s2] sm:$0x1]
    %v63 = vperm.slane %v61, 0
    %v67 = vunpack.c.l.b16 %v59
    %v68 = vunpack.c.l.b16 %v60
    %v69 = vpack.c.b16 %v68, %v67
    %vm70 = vcmask 89088
    %v72 = vsel %vm70, %v58, 0
    %vm74 = vcmask 1044480
    %vm75 = vcmask 1045504
    %v76 = vsel %vm74, 4294967295, 65535
    %v77 = vsel %vm75, %v76, 0
    %v79 = vand.u32 %v69, %v77
    %81 = vmatpush.bf16.msra.mxu0 0
    %82 = vmatpush.bf16.msra.mxu0 0
    %83 = vmatpush.bf16.msra.mxu0 0
    %84 = vmatpush.bf16.msra.mxu0 0
    %85 = vmatpush.bf16.msra.mxu0 0
    %86 = vmatpush.bf16.msra.mxu0 0
    %87 = vmatpush.bf16.msra.mxu0 0
    %88 = vmatpush.bf16.msra.mxu0 %v79
    %89 = vmatmul.bf16.gmra.mxu0 %v72
    %v90 = vpop.f32.mrf.mxu0
    %v91 = vadd.f32 %v63, %v90
    %v92 = vpop.f32.mrf.mxu0
    %93 = vdwg.mxu0
    %v94 = vmax.f32 %v91, 0.0
    %v95 = vpack.c.bf16 %v94, %v94
    %v96 = vld [vmem:[%s3] sm:$0xf]
    %v97 = vld [vmem:[%s3 + $0x4] sm:$0xf]
    %v98 = vld [vmem:[%s3 + $0x8] sm:$0xf]
    %v99 = vld [vmem:[%s3 + $0xc] sm:$0xf]
    %v100 = vld [vmem:[%s3 + $0x10] sm:$0xf]
    %v101 = vld [vmem:[%s3 + $0x14] sm:$0xf]
    %v102 = vld [vmem:[%s3 + $0x18] sm:$0xf]
    %v103 = vld [vmem:[%s3 + $0x1c] sm:$0xf]
    %v104 = vld [vmem:[%s3 + $0x20] sm:$0xf]
    %v105 = vld [vmem:[%s3 + $0x24] sm:$0xf]
    %v106 = vld [vmem:[%s3 + $0x28] sm:$0xf]
    %v107 = vld [vmem:[%s3 + $0x2c] sm:$0xf]
    %v108 = vld [vmem:[%s3 + $0x30] sm:$0xf]
    %v109 = vld [vmem:[%s3 + $0x34] sm:$0xf]
    %v110 = vld [vmem:[%s3 + $0x38] sm:$0xf]
    %v111 = vld [vmem:[%s3 + $0x3c] sm:$0xf]
    %v112 = vld [vmem:[%s4] sm:$0x1]
    %v114 = vperm.slane %v112, 0
    %v132 = vunpack.c.l.b16 %v96
    %v133 = vunpack.c.l.b16 %v97
    %v134 = vunpack.c.l.b16 %v98
    %v135 = vunpack.c.l.b16 %v99
    %v136 = vunpack.c.l.b16 %v100
    %v137 = vunpack.c.l.b16 %v101
    %v138 = vunpack.c.l.b16 %v102
    %v139 = vunpack.c.l.b16 %v103
    %v140 = vunpack.c.l.b16 %v104
    %v141 = vunpack.c.l.b16 %v105
    %v142 = vunpack.c.l.b16 %v106
    %v143 = vunpack.c.l.b16 %v107
    %v144 = vunpack.c.l.b16 %v108
    %v145 = vunpack.c.l.b16 %v109
    %v146 = vunpack.c.l.b16 %v110
    %v147 = vunpack.c.l.b16 %v111
    %v148 = vpack.c.b16 %v133, %v132
    %v149 = vpack.c.b16 %v135, %v134
    %v150 = vpack.c.b16 %v137, %v136
    %v151 = vpack.c.b16 %v139, %v138
    %v152 = vpack.c.b16 %v141, %v140
    %v153 = vpack.c.b16 %v143, %v142
    %v154 = vpack.c.b16 %v145, %v144
    %v155 = vpack.c.b16 %v147, %v146
    %164 = vmatpush.bf16.msra.mxu0 %v155
    %165 = vmatpush.bf16.msra.mxu0 %v154
    %166 = vmatpush.bf16.msra.mxu0 %v153
    %167 = vmatpush.bf16.msra.mxu0 %v152
    %168 = vmatpush.bf16.msra.mxu0 %v151
    %169 = vmatpush.bf16.msra.mxu0 %v150
    %170 = vmatpush.bf16.msra.mxu0 %v149
    %171 = vmatpush.bf16.msra.mxu0 %v148
    %172 = vmatmul.bf16.gmra.mxu0 %v95
    %v173 = vpop.f32.mrf.mxu0
    %v174 = vadd.f32 %v114, %v173
    %v175 = vpop.f32.mrf.mxu0
    %176 = vdwg.mxu0
    %v177 = vmax.f32 %v174, 0.0
    %v178 = vpack.c.bf16 %v177, %v177
    %v179 = vld [vmem:[%s5] sm:$0xf]
    %v180 = vld [vmem:[%s5 + $0x4] sm:$0xf]
    %v181 = vld [vmem:[%s5 + $0x8] sm:$0xf]
    %v182 = vld [vmem:[%s5 + $0xc] sm:$0xf]
    %v183 = vld [vmem:[%s5 + $0x10] sm:$0xf]
    %v184 = vld [vmem:[%s5 + $0x14] sm:$0xf]
    %v185 = vld [vmem:[%s5 + $0x18] sm:$0xf]
    %v186 = vld [vmem:[%s5 + $0x1c] sm:$0xf]
    %v187 = vld [vmem:[%s5 + $0x20] sm:$0xf]
    %v188 = vld [vmem:[%s5 + $0x24] sm:$0xf]
    %v189 = vld [vmem:[%s5 + $0x28] sm:$0xf]
    %v190 = vld [vmem:[%s5 + $0x2c] sm:$0xf]
    %v191 = vld [vmem:[%s5 + $0x30] sm:$0xf]
    %v192 = vld [vmem:[%s5 + $0x34] sm:$0xf]
    %v193 = vld [vmem:[%s5 + $0x38] sm:$0xf]
    %v194 = vld [vmem:[%s5 + $0x3c] sm:$0xf]
    %v195 = vld [vmem:[%s6] sm:$0x1]
    %v197 = vperm.slane %v195, 0
    %v215 = vunpack.c.l.b16 %v179
    %v216 = vunpack.c.l.b16 %v180
    %v217 = vunpack.c.l.b16 %v181
    %v218 = vunpack.c.l.b16 %v182
    %v219 = vunpack.c.l.b16 %v183
    %v220 = vunpack.c.l.b16 %v184
    %v221 = vunpack.c.l.b16 %v185
    %v222 = vunpack.c.l.b16 %v186
    %v223 = vunpack.c.l.b16 %v187
    %v224 = vunpack.c.l.b16 %v188
    %v225 = vunpack.c.l.b16 %v189
    %v226 = vunpack.c.l.b16 %v190
    %v227 = vunpack.c.l.b16 %v191
    %v228 = vunpack.c.l.b16 %v192
    %v229 = vunpack.c.l.b16 %v193
    %v230 = vunpack.c.l.b16 %v194
    %v231 = vpack.c.b16 %v216, %v215
    %v232 = vpack.c.b16 %v218, %v217
    %v233 = vpack.c.b16 %v220, %v219
    %v234 = vpack.c.b16 %v222, %v221
    %v235 = vpack.c.b16 %v224, %v223
    %v236 = vpack.c.b16 %v226, %v225
    %v237 = vpack.c.b16 %v228, %v227
    %v238 = vpack.c.b16 %v230, %v229
    %247 = vmatpush.bf16.msra.mxu0 %v238
    %248 = vmatpush.bf16.msra.mxu0 %v237
    %249 = vmatpush.bf16.msra.mxu0 %v236
    %250 = vmatpush.bf16.msra.mxu0 %v235
    %251 = vmatpush.bf16.msra.mxu0 %v234
    %252 = vmatpush.bf16.msra.mxu0 %v233
    %253 = vmatpush.bf16.msra.mxu0 %v232
    %254 = vmatpush.bf16.msra.mxu0 %v231
    %255 = vmatmul.bf16.gmra.mxu0 %v178
    %v256 = vpop.f32.mrf.mxu0
    %v257 = vadd.f32 %v197, %v256
    %v258 = vpop.f32.mrf.mxu0
    %259 = vdwg.mxu0
    %vm260 = vcmask 23552
    %261 = vst.msk [vmem:[%s7] sm:$0xff] %vm260, %v257
    // Predicated region
    $region38: #{tpu_custom_call.1} parent=1 // pred_check
      _
    $region39: #{tpu_custom_call.1} parent=1 // pred_check_branch
      %263 = sbr.rel (0) target = $region41
    $region40: #{tpu_custom_call.1} parent=1 // pred_region
      _
    $region41: #{tpu_custom_call.1} parent=1 // pred_fallthru
      _
    // Predicated region
    $region42: #{tpu_custom_call.1} parent=1 // pred_check
      _
    $region43: #{tpu_custom_call.1} parent=1 // pred_check_branch
      %265 = sbr.rel (0) target = $region45
    $region44: #{tpu_custom_call.1} parent=1 // pred_region
      _
    $region45: #{tpu_custom_call.1} parent=1 // pred_fallthru
      _
    %266 = vsyncpa [#allocation3], 1
    %267 = vsyncpa [#allocation5], 1

</llo_original>
